<compile_context>
chip_gen: v7x
topology: tpu7x:2x2x1
jax: 0.10.0
libtpu: 0.0.40
codegen_flags: <defaults>
</compile_context>

<pallas_src>
import functools

import jax
import jax.numpy as jnp
from jax.experimental import pallas as pl
from jax.experimental.pallas import tpu as pltpu


def _round_up(n: int, m: int) -> int:
    return ((n + m - 1) // m) * m


def attention_pooling_kernel(x_ref, v_ref, o_ref, m_sc, l_sc, acc_sc, *,
                             seq_len, block_s, needs_seq_mask):
    # x_ref:  (Bb, Sc, D) chunk of the input
    # v_ref:  (Bb, 1, D)  precomputed scale * W^T q (loop-invariant)
    # o_ref:  (Bb, D)     pooled context (written on the last S-chunk only)
    # m_sc, l_sc: (Bb, 1, 1) running max / denom; acc_sc: (Bb, 1, D) ctx
    si = pl.program_id(1)
    last = pl.num_programs(1) - 1

    @pl.when(si == 0)
    def _():
        m_sc[...] = jnp.full_like(m_sc, -jnp.inf)
        l_sc[...] = jnp.zeros_like(l_sc)
        acc_sc[...] = jnp.zeros_like(acc_sc)

    def update(x, s):
        # Flash-style online softmax update.
        m_prev = m_sc[...]
        m_new = jnp.maximum(m_prev, jnp.max(s, axis=-1, keepdims=True))
        alpha = jnp.exp(m_prev - m_new)                       # (Bb, 1, 1)
        p = jnp.exp(s - m_new)                                # (Bb, 1, Sc)
        l_sc[...] = alpha * l_sc[...] + jnp.sum(p, axis=-1, keepdims=True)
        acc_sc[...] = alpha * acc_sc[...] + jnp.einsum(
            'bqk,bkd->bqd', p.astype(x.dtype), x,
            preferred_element_type=jnp.float32)
        m_sc[...] = m_new

    def step(mask_tail):
        x = x_ref[...]                                        # (Bb, Sc, D)
        v = v_ref[...]                                        # (Bb, 1, D)
        if mask_tail:
            # Tail chunk only: zero-mask x rows past seq_len (they may hold
            # garbage from the clipped DMA) and mask the scores.
            k_row = si * block_s + jax.lax.broadcasted_iota(
                jnp.int32, (1, block_s, 1), 1)
            k_lane = si * block_s + jax.lax.broadcasted_iota(
                jnp.int32, (1, 1, block_s), 2)
            x = jnp.where(k_row < seq_len, x, jnp.zeros_like(x))
            s = jnp.einsum('bqd,bkd->bqk', v, x,
                           preferred_element_type=jnp.float32)
            s = jnp.where(k_lane < seq_len, s, -1e30)
        else:
            s = jnp.einsum('bqd,bkd->bqk', v, x,
                           preferred_element_type=jnp.float32)
        update(x, s)

    if needs_seq_mask:
        @pl.when(si == last)
        def _():
            step(True)

        @pl.when(si != last)
        def _():
            step(False)
    else:
        step(False)

    # Normalize exactly once, on the last chunk.
    @pl.when(si == last)
    def _():
        ctx = acc_sc[...] * pl.reciprocal(l_sc[...], approx=False)
        o_ref[...] = ctx[:, 0, :].astype(o_ref.dtype)


def attention_pooling(x, weight, bias, query, *, block_b=8,
                      x_block_vmem_bytes=None):
    """x: (B, S, D); weight: (D, D) torch-Linear layout (out, in); bias, query: (D,)."""
    B, S, D = x.shape
    scale = float(D) ** -0.5
    itemsize = x.dtype.itemsize

    # Collapse the Linear: scores depend on x only through (scale * W^T q) . x_s
    # (the scale * (q . b) term is constant over the sequence and cancels in
    # the softmax, so `bias` is intentionally unused).
    v = scale * (weight.astype(jnp.float32).T @ query.astype(jnp.float32))

    # Batch blocking: 8 (sublane-dense output stores) when possible; for B < 8
    # use the full extent instead of padding, so no wasted HBM reads.
    bb = B if B < 8 else max(8, (min(block_b, B) // 8) * 8)

    # Sequence chunking: the VMEM budget alone sets the chunk size (no cap).
    # Budget accounts for lane padding: a row of D elements occupies
    # round_up(D, 128) lanes in VMEM.
    d_pad = _round_up(D, 128)
    if x_block_vmem_bytes is None:
        try:
            vmem_cap = pltpu.get_tpu_info().vmem_capacity_bytes
        except Exception:
            vmem_cap = 64 * 1024 * 1024            # v7x-safe fallback
        # Per pipeline buffer (x is double-buffered): 16 MiB on 128 MiB parts
        # (v5e/v6e), ~12 MiB on v7x's 64 MiB physical VMEM.
        x_block_vmem_bytes = min(16 * 1024 * 1024, vmem_cap // 5)
    row_bytes = bb * d_pad * itemsize
    rows = max(8, (x_block_vmem_bytes // row_bytes) // 8 * 8)
    if S <= rows:
        sc = S                                     # full extent, no masking
        needs_seq_mask = False
    else:
        sc = rows
        needs_seq_mask = (S % sc) != 0

    grid = (pl.cdiv(B, bb), pl.cdiv(S, sc))

    # Pre-broadcast v so the kernel does no per-step broadcast_in_dim.
    v_arr = jnp.broadcast_to(v.astype(x.dtype).reshape(1, 1, D), (bb, 1, D))

    # Scoped-VMEM limit sized to the actual pipeline footprint; with the
    # default budget this stays well under v7x's 64 MiB physical VMEM while
    # lifting v5e's 16 MiB default scoped limit.
    x_block_bytes = bb * _round_up(sc, 8) * d_pad * itemsize
    pipeline_bytes = (2 * x_block_bytes                         # x (2 bufs)
                      + 2 * _round_up(bb, 8) * d_pad * itemsize  # out + v
                      + _round_up(bb, 8) * d_pad * 4 * 3)        # f32 scratch
    vmem_limit = max(32 * 1024 * 1024, int(1.25 * pipeline_bytes) + (4 << 20))

    # Memory-bound hint for the surrounding XLA schedule.
    cost = pl.CostEstimate(
        flops=4 * B * S * D,
        transcendentals=B * S,
        bytes_accessed=(B * S * D + B * D + bb * D) * itemsize,
    )

    kernel = functools.partial(attention_pooling_kernel, seq_len=S, block_s=sc,
                               needs_seq_mask=needs_seq_mask)

    # NOTE: production D should ideally be a multiple of 128 (lane-dense);
    # smaller D relies on lane padding (correct, just under-utilized).
    # TODO(synk): for tiny B on v7x (single batch block) the sequence axis
    # could additionally be split across the two TensorCores with a small
    # combine step; not implemented here.
    return pl.pallas_call(
        kernel,
        out_shape=jax.ShapeDtypeStruct((B, D), x.dtype),
        grid_spec=pltpu.PrefetchScalarGridSpec(
            num_scalar_prefetch=0,
            grid=grid,
            in_specs=[
                pl.BlockSpec((bb, sc, D), lambda bi, si: (bi, si, 0)),  # x
                pl.BlockSpec((bb, 1, D), lambda bi, si: (0, 0, 0)),     # v
            ],
            out_specs=pl.BlockSpec((bb, D), lambda bi, si: (bi, 0)),
            scratch_shapes=[
                pltpu.VMEM((bb, 1, 1), jnp.float32),   # running max
                pltpu.VMEM((bb, 1, 1), jnp.float32),   # running denom
                pltpu.VMEM((bb, 1, D), jnp.float32),   # running unnormed ctx
            ],
        ),
        compiler_params=pltpu.CompilerParams(
            dimension_semantics=("parallel", "arbitrary"),
            vmem_limit_bytes=vmem_limit),
        cost_estimate=cost,
    )(x, v_arr)


def attention_pooling_ref(x, weight, bias, query):
    # Pure-JAX reference mirroring the PyTorch module exactly (keeps the bias,
    # validating that dropping it in the kernel is mathematically safe).
    keys = jnp.einsum("bsd,od->bso", x, weight) + bias
    scores = jnp.einsum("d,bsd->bs", query, keys) * (x.shape[-1] ** -0.5)
    attn = jax.nn.softmax(scores, axis=-1)
    return jnp.einsum("bs,bsd->bd", attn, x)


if __name__ == "__main__":
    key = jax.random.PRNGKey(0)
    kx, kq, kw, kb = jax.random.split(key, 4)

    D = 32
    bound = 1.0 / (D ** 0.5)                                 # nn.Linear init range
    query = jax.random.normal(kq, (D,), dtype=jnp.float32)   # torch.randn(d_model)
    weight = jax.random.uniform(kw, (D, D), minval=-bound, maxval=bound,
                                dtype=jnp.float32)
    bias = jax.random.uniform(kb, (D,), minval=-bound, maxval=bound,
                              dtype=jnp.float32)

    # Cases: single block; unaligned B/S full-extent blocks (no padding, no
    # mask); multi-chunk online softmax with a masked tail chunk; partial
    # batch block plus masked seq tail (small budgets force chunking).
    cases = [
        ((2, 8), {}),
        ((3, 13), {}),
        ((2, 20), dict(x_block_vmem_bytes=8 * 1024)),
        ((13, 40), dict(x_block_vmem_bytes=64 * 1024)),
    ]
    for (B, S), kwargs in cases:
        x = jax.random.normal(jax.random.fold_in(kx, B * 1000 + S),
                              (B, S, D), dtype=jnp.float32)
        out = jax.block_until_ready(
            attention_pooling(x, weight, bias, query, **kwargs))
        ref = attention_pooling_ref(x, weight, bias, query)
        assert out.shape == (B, D)
        assert jnp.allclose(out, ref, atol=1e-4, rtol=1e-4), \
            f"mismatch for B={B}, S={S}"

    print("KERNEL_OK")
</pallas_src>

<mosaic_0001>
module attributes {stable_mosaic.version = 11 : i64} {
  func.func @attention_pooling_kernel(%arg0: i32, %arg1: i32, %arg2: memref<2x8x32xf32, #tpu.memory_space<vmem>>, %arg3: memref<2x1x32xf32, #tpu.memory_space<vmem>>, %arg4: memref<2x32xf32, #tpu.memory_space<vmem>>, %arg5: memref<2x1x1xf32, #tpu.memory_space<vmem>>, %arg6: memref<2x1x1xf32, #tpu.memory_space<vmem>>, %arg7: memref<2x1x32xf32, #tpu.memory_space<vmem>>) attributes {dimension_semantics = [#tpu.dimension_semantics<parallel>, #tpu.dimension_semantics<arbitrary>], iteration_bounds = array<i64: 1, 1>, scalar_prefetch = 0 : i64, scratch_operands = 3 : i64, tpu.core_type = #tpu.core_type<tc>, window_params = [{transform_indices = @transform_0, window_bounds = array<i64: 2, 8, 32>}, {pipeline_mode = #tpu.pipeline_mode<synchronous>, transform_indices = @transform_1, window_bounds = array<i64: 2, 1, 32>}, {transform_indices = @transform_2, window_bounds = array<i64: 2, 32>}]} {
    %c0_i32 = arith.constant 0 : i32
    %0 = arith.cmpi eq, %arg1, %c0_i32 : i32
    %1 = arith.extui %0 : i1 to i32
    %c0_i32_0 = arith.constant 0 : i32
    %2 = arith.cmpi ne, %1, %c0_i32_0 : i32
    scf.if %2 {
      %cst_29 = arith.constant 0xFF800000 : f32
      %31 = vector.broadcast %cst_29 : f32 to vector<2x1x1xf32>
      %c0_30 = arith.constant 0 : index
      %c0_31 = arith.constant 0 : index
      %c0_32 = arith.constant 0 : index
      %32 = vector.load %arg5[%c0_30, %c0_31, %c0_32] : memref<2x1x1xf32, #tpu.memory_space<vmem>>, vector<2x1x1xf32>
      tpu.vector_store %arg5[%c0_30, %c0_31, %c0_32], %31 {strides = array<i32>} : memref<2x1x1xf32, #tpu.memory_space<vmem>>, vector<2x1x1xf32>,
      %cst_33 = arith.constant 0.000000e+00 : f32
      %33 = vector.broadcast %cst_33 : f32 to vector<2x1x1xf32>
      %c0_34 = arith.constant 0 : index
      %c0_35 = arith.constant 0 : index
      %c0_36 = arith.constant 0 : index
      %34 = vector.load %arg6[%c0_34, %c0_35, %c0_36] : memref<2x1x1xf32, #tpu.memory_space<vmem>>, vector<2x1x1xf32>
      tpu.vector_store %arg6[%c0_34, %c0_35, %c0_36], %33 {strides = array<i32>} : memref<2x1x1xf32, #tpu.memory_space<vmem>>, vector<2x1x1xf32>,
      %cst_37 = arith.constant 0.000000e+00 : f32
      %35 = vector.broadcast %cst_37 : f32 to vector<2x1x32xf32>
      %c0_38 = arith.constant 0 : index
      %c0_39 = arith.constant 0 : index
      %c0_40 = arith.constant 0 : index
      %36 = vector.load %arg7[%c0_38, %c0_39, %c0_40] : memref<2x1x32xf32, #tpu.memory_space<vmem>>, vector<2x1x32xf32>
      tpu.vector_store %arg7[%c0_38, %c0_39, %c0_40], %35 {strides = array<i32>} : memref<2x1x32xf32, #tpu.memory_space<vmem>>, vector<2x1x32xf32>,
    } else {
    }
    %c0 = arith.constant 0 : index
    %c0_1 = arith.constant 0 : index
    %c0_2 = arith.constant 0 : index
    %3 = vector.load %arg2[%c0, %c0_1, %c0_2] : memref<2x8x32xf32, #tpu.memory_space<vmem>>, vector<2x8x32xf32>
    %c0_3 = arith.constant 0 : index
    %c0_4 = arith.constant 0 : index
    %c0_5 = arith.constant 0 : index
    %4 = vector.load %arg3[%c0_3, %c0_4, %c0_5] : memref<2x1x32xf32, #tpu.memory_space<vmem>>, vector<2x1x32xf32>
    "tpu.trace_start"() <{level = 10 : i32, message = "bqd,bkd->bqk"}> : () -> ()
    %cst = arith.constant dense<0.000000e+00> : vector<2x1x8xf32>
    %5 = tpu.matmul %4, %3, %cst {dimension_numbers = #tpu.dot_dimension_numbers<[2], [2], [1], [1], [0, 0, 0, 1, 1, 1], [0], [0]>} : vector<2x1x32xf32>, vector<2x8x32xf32>, vector<2x1x8xf32> -> vector<2x1x8xf32>
    "tpu.trace_stop"() : () -> ()
    %c0_6 = arith.constant 0 : index
    %c0_7 = arith.constant 0 : index
    %c0_8 = arith.constant 0 : index
    %6 = vector.load %arg5[%c0_6, %c0_7, %c0_8] : memref<2x1x1xf32, #tpu.memory_space<vmem>>, vector<2x1x1xf32>
    %cst_9 = arith.constant dense<0xFF800000> : vector<2x1xf32>
    %7 = vector.multi_reduction <maximumf>, %5, %cst_9 [2] : vector<2x1x8xf32> to vector<2x1xf32>
    %8 = vector.shape_cast %7 : vector<2x1xf32> to vector<2x1x1xf32>
    %9 = arith.maximumf %6, %8 : vector<2x1x1xf32>
    %10 = arith.subf %6, %9 : vector<2x1x1xf32>
    %11 = math.exp %10 : vector<2x1x1xf32>
    %12 = vector.broadcast %9 : vector<2x1x1xf32> to vector<2x1x8xf32>
    %13 = arith.subf %5, %12 : vector<2x1x8xf32>
    %14 = math.exp %13 : vector<2x1x8xf32>
    %c0_10 = arith.constant 0 : index
    %c0_11 = arith.constant 0 : index
    %c0_12 = arith.constant 0 : index
    %15 = vector.load %arg6[%c0_10, %c0_11, %c0_12] : memref<2x1x1xf32, #tpu.memory_space<vmem>>, vector<2x1x1xf32>
    %16 = arith.mulf %11, %15 : vector<2x1x1xf32>
    %cst_13 = arith.constant dense<0.000000e+00> : vector<2x1xf32>
    %17 = vector.multi_reduction <add>, %14, %cst_13 [2] : vector<2x1x8xf32> to vector<2x1xf32>
    %18 = vector.shape_cast %17 : vector<2x1xf32> to vector<2x1x1xf32>
    %19 = arith.addf %16, %18 : vector<2x1x1xf32>
    %c0_14 = arith.constant 0 : index
    %c0_15 = arith.constant 0 : index
    %c0_16 = arith.constant 0 : index
    %20 = vector.load %arg6[%c0_14, %c0_15, %c0_16] : memref<2x1x1xf32, #tpu.memory_space<vmem>>, vector<2x1x1xf32>
    tpu.vector_store %arg6[%c0_14, %c0_15, %c0_16], %19 {strides = array<i32>} : memref<2x1x1xf32, #tpu.memory_space<vmem>>, vector<2x1x1xf32>,
    %c0_17 = arith.constant 0 : index
    %c0_18 = arith.constant 0 : index
    %c0_19 = arith.constant 0 : index
    %21 = vector.load %arg7[%c0_17, %c0_18, %c0_19] : memref<2x1x32xf32, #tpu.memory_space<vmem>>, vector<2x1x32xf32>
    %22 = vector.broadcast %11 : vector<2x1x1xf32> to vector<2x1x32xf32>
    %23 = arith.mulf %22, %21 : vector<2x1x32xf32>
    "tpu.trace_start"() <{level = 10 : i32, message = "bqk,bkd->bqd"}> : () -> ()
    %cst_20 = arith.constant dense<0.000000e+00> : vector<2x1x32xf32>
    %24 = tpu.matmul %14, %3, %cst_20 {dimension_numbers = #tpu.dot_dimension_numbers<[2], [1], [1], [2], [0, 0, 0, 1, 1, 2], [0], [0]>} : vector<2x1x8xf32>, vector<2x8x32xf32>, vector<2x1x32xf32> -> vector<2x1x32xf32>
    "tpu.trace_stop"() : () -> ()
    %25 = arith.addf %23, %24 : vector<2x1x32xf32>
    %c0_21 = arith.constant 0 : index
    %c0_22 = arith.constant 0 : index
    %c0_23 = arith.constant 0 : index
    %26 = vector.load %arg7[%c0_21, %c0_22, %c0_23] : memref<2x1x32xf32, #tpu.memory_space<vmem>>, vector<2x1x32xf32>
    tpu.vector_store %arg7[%c0_21, %c0_22, %c0_23], %25 {strides = array<i32>} : memref<2x1x32xf32, #tpu.memory_space<vmem>>, vector<2x1x32xf32>,
    %c0_24 = arith.constant 0 : index
    %c0_25 = arith.constant 0 : index
    %c0_26 = arith.constant 0 : index
    %27 = vector.load %arg5[%c0_24, %c0_25, %c0_26] : memref<2x1x1xf32, #tpu.memory_space<vmem>>, vector<2x1x1xf32>
    tpu.vector_store %arg5[%c0_24, %c0_25, %c0_26], %9 {strides = array<i32>} : memref<2x1x1xf32, #tpu.memory_space<vmem>>, vector<2x1x1xf32>,
    %c0_i32_27 = arith.constant 0 : i32
    %28 = arith.cmpi eq, %arg1, %c0_i32_27 : i32
    %29 = arith.extui %28 : i1 to i32
    %c0_i32_28 = arith.constant 0 : i32
    %30 = arith.cmpi ne, %29, %c0_i32_28 : i32
    scf.if %30 {
      %c0_29 = arith.constant 0 : index
      %c0_30 = arith.constant 0 : index
      %c0_31 = arith.constant 0 : index
      %31 = vector.load %arg7[%c0_29, %c0_30, %c0_31] : memref<2x1x32xf32, #tpu.memory_space<vmem>>, vector<2x1x32xf32>
      %c0_32 = arith.constant 0 : index
      %c0_33 = arith.constant 0 : index
      %c0_34 = arith.constant 0 : index
      %32 = vector.load %arg6[%c0_32, %c0_33, %c0_34] : memref<2x1x1xf32, #tpu.memory_space<vmem>>, vector<2x1x1xf32>
      %33 = tpu.reciprocal %32 : vector<2x1x1xf32> -> vector<2x1x1xf32>
      %34 = vector.broadcast %33 : vector<2x1x1xf32> to vector<2x1x32xf32>
      %35 = arith.mulf %31, %34 : vector<2x1x32xf32>
      %36 = vector.shape_cast %35 : vector<2x1x32xf32> to vector<2x32xf32>
      %c0_35 = arith.constant 0 : index
      %c0_36 = arith.constant 0 : index
      %37 = vector.load %arg4[%c0_35, %c0_36] : memref<2x32xf32, #tpu.memory_space<vmem>>, vector<2x32xf32>
      tpu.vector_store %arg4[%c0_35, %c0_36], %36 {strides = array<i32>} : memref<2x32xf32, #tpu.memory_space<vmem>>, vector<2x32xf32>,
    } else {
    }
    return
  }
  func.func @transform_0(%arg0: i32, %arg1: i32) -> (i32, i32, i32) {
    %c0_i32 = arith.constant 0 : i32
    %c0_i32_0 = arith.constant 0 : i32
    return %arg0, %arg1, %c0_i32 : i32, i32, i32
  }
  func.func @transform_1(%arg0: i32, %arg1: i32) -> (i32, i32, i32) {
    %c0_i32 = arith.constant 0 : i32
    %c0_i32_0 = arith.constant 0 : i32
    %c0_i32_1 = arith.constant 0 : i32
    %c0_i32_2 = arith.constant 0 : i32
    return %c0_i32, %c0_i32_0, %c0_i32_1 : i32, i32, i32
  }
  func.func @transform_2(%arg0: i32, %arg1: i32) -> (i32, i32) {
    %c0_i32 = arith.constant 0 : i32
    %c0_i32_0 = arith.constant 0 : i32
    return %arg0, %c0_i32 : i32, i32
  }
}

</mosaic_0001>

<llo_original>
// kernel: tpu_custom_call.1
$region0: #{tpu_custom_call.1}
  #allocation0 [shape = 'u32[]', space=smem, size = 0x4, offset = 0x4, fixed_abs, tag = 'smem constant byte address 0x4 - core index']
  #allocation1 [shape = 'u32[144,128]{1,0:T(1,128)}', space=vmem, size = 0x12000, scoped, tag = 'internal scratch']
  #allocation2 [shape = 'f32[2,1,1]{2,1,0:T(1,128)}', space=vmem, size = 0x400, scoped, tag = 'scratch operand']
  #allocation3 [shape = 'f32[2,1,1]{2,1,0:T(1,128)}', space=vmem, size = 0x400, scoped, tag = 'scratch operand']
  #allocation4 [shape = 'f32[2,1,32]{2,1,0:T(1,128)}', space=vmem, size = 0x400, scoped, tag = 'scratch operand']
  %s0 = inlined_call_operand.hbm [shape: f32[2,8,32], index: 0, kind: input, shape index: {}]
  %s1 = inlined_call_operand.vmem [shape: f32[2,1,32], index: 1, kind: input, shape index: {}]
  %s2 = inlined_call_operand.hbm [shape: f32[2,32], index: 2, kind: output, shape index: {}]
  %s3 = sld [smem:[#allocation0]]
  $region30: #{tpu_custom_call.1} parent=0
    _
  %s5 = ssub.s32 1, %s3
  %s6 = scalar_select 0, %s5, %s3
  $region1: #{tpu_custom_call.1} parent=0
    #allocation5 [shape = 'u8[8192]{0}', space=vmem, size = 0x2000, scoped, tag = 'input window, operand 0, single buffered']
    #allocation6 [shape = 's32[1]{0}', space=sflag, size = 0x4, scoped, tag = 'scoped memory for tpu_custom_call.1']
    #allocation7 [shape = 's32[1]{0}', space=sflag, size = 0x4, scoped, tag = 'scoped memory for tpu_custom_call.1']
    #allocation8 [shape = 'u8[1024]{0}', space=vmem, size = 0x400, scoped, tag = 'output window, operand 0, single buffered']
    %7 = vsyncpa [#allocation6], 0
    %8 = vsyncpa [#allocation7], 0
    // Predicated region
    $region2: #{tpu_custom_call.1} parent=1 // pred_check
      _
    $region3: #{tpu_custom_call.1} parent=1 // pred_check_branch
      %10 = sbr.rel (0) target = $region5
    $region4: #{tpu_custom_call.1} parent=1 // pred_region
      %s12 = ssub.s32 256, 256
      %13 = vsyncadd [#allocation6], %s12
      %s14 = sshll.u32 [#allocation5], 4
      %s15 = int_to_ptr.vmem [resolvable:$true] %s14
      %20 = dma.hbm_to_vmem [thread:$0]  %s0, 256, %s15, [#allocation6], 128, 128, 8
    $region5: #{tpu_custom_call.1} parent=1 // pred_fallthru
      _
    // Predicated region
    $region6: #{tpu_custom_call.1} parent=1 // pred_check
      _
    $region7: #{tpu_custom_call.1} parent=1 // pred_check_branch
      %22 = sbr.rel (0) target = $region9
    $region8: #{tpu_custom_call.1} parent=1 // pred_region
      _
    $region9: #{tpu_custom_call.1} parent=1 // pred_fallthru
      _
    // Predicated region
    $region10: #{tpu_custom_call.1} parent=1 // pred_check
      _
    $region11: #{tpu_custom_call.1} parent=1 // pred_check_branch
      %24 = sbr.rel (0) target = $region13
    $region12: #{tpu_custom_call.1} parent=1 // pred_region
      %25 = dma.done [#allocation6], 256
    $region13: #{tpu_custom_call.1} parent=1 // pred_fallthru
      _
    %p26 = scmp.eq.s32.totalorder 0, 0
    // Predicated region
    $region14: #{tpu_custom_call.1} parent=1 // pred_check
      %p27 = pneg %p26
    $region15: #{tpu_custom_call.1} parent=1 // pred_check_branch
      %29 = sbr.rel (%p27) target = $region17
    $region16: #{tpu_custom_call.1} parent=1 // pred_region
      %vm30 = vcmask 0
      %31 = vst.msk [vmem:[#allocation2] sm:$0x1] %vm30, -inf
      %32 = vst.msk [vmem:[#allocation2 + $0x1] sm:$0x1] %vm30, -inf
      %33 = vst.msk [vmem:[#allocation3] sm:$0x1] %vm30, 0.0
      %34 = vst.msk [vmem:[#allocation3 + $0x1] sm:$0x1] %vm30, 0.0
      %vm35 = vcmask 253952
      %36 = vst.msk [vmem:[#allocation4] sm:$0x1] %vm35, 0.0
      %37 = vst.msk [vmem:[#allocation4 + $0x1] sm:$0x1] %vm35, 0.0
    $region17: #{tpu_custom_call.1} parent=1 // pred_fallthru
      _
    %v38 = vld [vmem:[#allocation5] sm:$0xff]
    %v39 = vld [vmem:[#allocation5 + $0x8] sm:$0xff]
    %v40 = vld [vmem:[%s1] sm:$0x1]
    %v41 = vld [vmem:[%s1 + $0x1] sm:$0x1]
    %vm42 = vcmask 261120
    %v44 = vsel %vm42, %v40, 0
    %v47 = vsel %vm42, %v38, 0
    %49 = vmatprep.subr.mxu0 0.0
    %50 = vmatpush1.xpose.msra.mxu0 %v47
    %51 = vmatprep.subr.mxu0 0.0
    %52 = vmatpush1.xpose.msra.mxu0 0.0
    %53 = vmatprep.subr.mxu0 0.0
    %54 = vmatpush1.xpose.msra.mxu0 0.0
    %55 = vmatprep.subr.mxu0 0.0
    %56 = vmatpush1.xpose.msra.mxu0 0.0
    %57 = vmatprep.subr.mxu0 0.0
    %58 = vmatpush1.xpose.msra.mxu0 0.0
    %59 = vmatprep.subr.mxu0 0.0
    %60 = vmatpush1.xpose.msra.mxu0 0.0
    %61 = vmatprep.subr.mxu0 0.0
    %62 = vmatpush1.xpose.msra.mxu0 0.0
    %63 = vmatprep.subr.mxu0 0.0
    %64 = vmatpush1.xpose.msra.mxu0 0.0
    %65 = vmatprep.subr.mxu0 0.0
    %66 = vmatpush1.xpose.msra.mxu0 0.0
    %67 = vmatprep.subr.mxu0 0.0
    %68 = vmatpush1.xpose.msra.mxu0 0.0
    %69 = vmatprep.subr.mxu0 0.0
    %70 = vmatpush1.xpose.msra.mxu0 0.0
    %71 = vmatprep.subr.mxu0 0.0
    %72 = vmatpush1.xpose.msra.mxu0 0.0
    %73 = vmatprep.subr.mxu0 0.0
    %74 = vmatpush1.xpose.msra.mxu0 0.0
    %75 = vmatprep.subr.mxu0 0.0
    %76 = vmatpush1.xpose.msra.mxu0 0.0
    %77 = vmatprep.subr.mxu0 0.0
    %78 = vmatpush1.xpose.msra.mxu0 0.0
    %79 = vmatprep.subr.mxu0 0.0
    %80 = vmatpush1.xpose.msra.mxu0 0.0
    %81 = vmatprep.subr.mxu0 0.0
    %82 = vmatpush1.xpose.msra.mxu0 0.0
    %83 = vmatprep.subr.mxu0 0.0
    %84 = vmatpush1.xpose.msra.mxu0 0.0
    %85 = vmatprep.subr.mxu0 0.0
    %86 = vmatpush1.xpose.msra.mxu0 0.0
    %87 = vmatprep.subr.mxu0 0.0
    %88 = vmatpush1.xpose.msra.mxu0 0.0
    %89 = vmatprep.subr.mxu0 0.0
    %90 = vmatpush1.xpose.msra.mxu0 0.0
    %91 = vmatprep.subr.mxu0 0.0
    %92 = vmatpush1.xpose.msra.mxu0 0.0
    %93 = vmatprep.subr.mxu0 0.0
    %94 = vmatpush1.xpose.msra.mxu0 0.0
    %95 = vmatprep.subr.mxu0 0.0
    %96 = vmatpush1.xpose.msra.mxu0 0.0
    %97 = vmatprep.subr.mxu0 0.0
    %98 = vmatpush1.xpose.msra.mxu0 0.0
    %99 = vmatprep.subr.mxu0 0.0
    %100 = vmatpush1.xpose.msra.mxu0 0.0
    %101 = vmatprep.subr.mxu0 0.0
    %102 = vmatpush1.xpose.msra.mxu0 0.0
    %103 = vmatprep.subr.mxu0 0.0
    %104 = vmatpush1.xpose.msra.mxu0 0.0
    %105 = vmatprep.subr.mxu0 0.0
    %106 = vmatpush1.xpose.msra.mxu0 0.0
    %107 = vmatprep.subr.mxu0 0.0
    %108 = vmatpush1.xpose.msra.mxu0 0.0
    %109 = vmatprep.subr.mxu0 0.0
    %110 = vmatpush1.xpose.msra.mxu0 0.0
    %111 = vmatprep.subr.mxu0 0.0
    %112 = vmatpush1.xpose.msra.mxu0 0.0
    %113 = vmatprep.mubr.f32.mxu0 0.0
    %114 = vmatmul.mubr.f32.gmra.mrb[0].mxu0 %v44
    %v115 = vpop.f32.mrb[0].mxu0
    %v116 = vadd.f32 0.0, %v115
    %v117 = vpop.f32.mrb[0].mxu0
    %118 = vdwg.mxu0
    %v120 = vsel %vm42, %v41, 0
    %v123 = vsel %vm42, %v39, 0
    %125 = vmatprep.subr.mxu0 0.0
    %126 = vmatpush1.xpose.msra.mxu0 %v123
    %127 = vmatprep.subr.mxu0 0.0
    %128 = vmatpush1.xpose.msra.mxu0 0.0
    %129 = vmatprep.subr.mxu0 0.0
    %130 = vmatpush1.xpose.msra.mxu0 0.0
    %131 = vmatprep.subr.mxu0 0.0
    %132 = vmatpush1.xpose.msra.mxu0 0.0
    %133 = vmatprep.subr.mxu0 0.0
    %134 = vmatpush1.xpose.msra.mxu0 0.0
    %135 = vmatprep.subr.mxu0 0.0
    %136 = vmatpush1.xpose.msra.mxu0 0.0
    %137 = vmatprep.subr.mxu0 0.0
    %138 = vmatpush1.xpose.msra.mxu0 0.0
    %139 = vmatprep.subr.mxu0 0.0
    %140 = vmatpush1.xpose.msra.mxu0 0.0
    %141 = vmatprep.subr.mxu0 0.0
    %142 = vmatpush1.xpose.msra.mxu0 0.0
    %143 = vmatprep.subr.mxu0 0.0
    %144 = vmatpush1.xpose.msra.mxu0 0.0
    %145 = vmatprep.subr.mxu0 0.0
    %146 = vmatpush1.xpose.msra.mxu0 0.0
    %147 = vmatprep.subr.mxu0 0.0
    %148 = vmatpush1.xpose.msra.mxu0 0.0
    %149 = vmatprep.subr.mxu0 0.0
    %150 = vmatpush1.xpose.msra.mxu0 0.0
    %151 = vmatprep.subr.mxu0 0.0
    %152 = vmatpush1.xpose.msra.mxu0 0.0
    %153 = vmatprep.subr.mxu0 0.0
    %154 = vmatpush1.xpose.msra.mxu0 0.0
    %155 = vmatprep.subr.mxu0 0.0
    %156 = vmatpush1.xpose.msra.mxu0 0.0
    %157 = vmatprep.subr.mxu0 0.0
    %158 = vmatpush1.xpose.msra.mxu0 0.0
    %159 = vmatprep.subr.mxu0 0.0
    %160 = vmatpush1.xpose.msra.mxu0 0.0
    %161 = vmatprep.subr.mxu0 0.0
    %162 = vmatpush1.xpose.msra.mxu0 0.0
    %163 = vmatprep.subr.mxu0 0.0
    %164 = vmatpush1.xpose.msra.mxu0 0.0
    %165 = vmatprep.subr.mxu0 0.0
    %166 = vmatpush1.xpose.msra.mxu0 0.0
    %167 = vmatprep.subr.mxu0 0.0
    %168 = vmatpush1.xpose.msra.mxu0 0.0
    %169 = vmatprep.subr.mxu0 0.0
    %170 = vmatpush1.xpose.msra.mxu0 0.0
    %171 = vmatprep.subr.mxu0 0.0
    %172 = vmatpush1.xpose.msra.mxu0 0.0
    %173 = vmatprep.subr.mxu0 0.0
    %174 = vmatpush1.xpose.msra.mxu0 0.0
    %175 = vmatprep.subr.mxu0 0.0
    %176 = vmatpush1.xpose.msra.mxu0 0.0
    %177 = vmatprep.subr.mxu0 0.0
    %178 = vmatpush1.xpose.msra.mxu0 0.0
    %179 = vmatprep.subr.mxu0 0.0
    %180 = vmatpush1.xpose.msra.mxu0 0.0
    %181 = vmatprep.subr.mxu0 0.0
    %182 = vmatpush1.xpose.msra.mxu0 0.0
    %183 = vmatprep.subr.mxu0 0.0
    %184 = vmatpush1.xpose.msra.mxu0 0.0
    %185 = vmatprep.subr.mxu0 0.0
    %186 = vmatpush1.xpose.msra.mxu0 0.0
    %187 = vmatprep.subr.mxu0 0.0
    %188 = vmatpush1.xpose.msra.mxu0 0.0
    %189 = vmatprep.mubr.f32.mxu0 0.0
    %190 = vmatmul.mubr.f32.gmra.mrb[0].mxu0 %v120
    %v191 = vpop.f32.mrb[0].mxu0
    %v192 = vadd.f32 0.0, %v191
    %v193 = vpop.f32.mrb[0].mxu0
    %194 = vdwg.mxu0
    %v195 = vld [vmem:[#allocation2] sm:$0x1]
    %v196 = vld [vmem:[#allocation2 + $0x1] sm:$0x1]
    %vm197 = vcmask 57344
    %v198 = vsel %vm197, %v116, -inf
    %199 = vmax.xlane.f32.xlu0 %v198
    %v200 = vpop.xlane.xlu0 %199
    %v201 = vsel %vm197, %v192, -inf
    %202 = vmax.xlane.f32.xlu0 %v201
    %v203 = vpop.xlane.xlu0 %202
    %v204 = vmax.f32 %v195, %v200
    %v205 = vmax.f32 %v196, %v203
    %v206 = vsub.f32 %v195, %v204
    %v207 = vsub.f32 %v196, %v205
    %v208 = vmul.f32 %v206, 1.442695
    %v209 = vpow.pop %v208
    %v210 = vmul.f32 %v207, 1.442695
    %v211 = vpow.pop %v210
    %213 = vset.pattern.permute.xlu0 0
    %214 = vperm.xlu0 %213, %v204
    %v215 = vpop.permute.xlu0 %214
    %v217 = vlaneseq
    %v218 = vshrl.u32 %v217, 7
    %v219 = vsub.s32 0, %v218
    %v220 = vrot.slane %v215, %v219
    %222 = vset.pattern.permute.xlu0 0
    %223 = vperm.xlu0 %222, %v205
    %v224 = vpop.permute.xlu0 %223
    %v226 = vlaneseq
    %v227 = vshrl.u32 %v226, 7
    %v228 = vsub.s32 0, %v227
    %v229 = vrot.slane %v224, %v228
    %v230 = vsub.f32 %v116, %v220
    %v231 = vsub.f32 %v192, %v229
    %v232 = vmul.f32 %v230, 1.442695
    %v233 = vpow.pop %v232
    %v234 = vmul.f32 %v231, 1.442695
    %v235 = vpow.pop %v234
    %v236 = vld [vmem:[#allocation3] sm:$0x1]
    %v237 = vld [vmem:[#allocation3 + $0x1] sm:$0x1]
    %v238 = vmul.f32 %v209, %v236
    %v239 = vmul.f32 %v211, %v237
    %v240 = vsel %vm197, %v233, 0.0
    %241 = vadd.xlane.f32.xlu0 %v240
    %v242 = vpop.xlane.xlu0 %241
    %v243 = vsel %vm197, %v235, 0.0
    %244 = vadd.xlane.f32.xlu0 %v243
    %v245 = vpop.xlane.xlu0 %244
    %v246 = vadd.f32 %v238, %v242
    %v247 = vadd.f32 %v239, %v245
    %vm248 = vcmask 0
    %249 = vst.msk [vmem:[#allocation3] sm:$0x1] %vm248, %v246
    %250 = vst.msk [vmem:[#allocation3 + $0x1] sm:$0x1] %vm248, %v247
    %v251 = vld [vmem:[#allocation4] sm:$0x1]
    %v252 = vld [vmem:[#allocation4 + $0x1] sm:$0x1]
    %254 = vset.pattern.permute.xlu0 0
    %255 = vperm.xlu0 %254, %v209
    %v256 = vpop.permute.xlu0 %255
    %v258 = vlaneseq
    %v259 = vshrl.u32 %v258, 7
    %v260 = vsub.s32 0, %v259
    %v261 = vrot.slane %v256, %v260
    %263 = vset.pattern.permute.xlu0 0
    %264 = vperm.xlu0 %263, %v211
    %v265 = vpop.permute.xlu0 %264
    %v267 = vlaneseq
    %v268 = vshrl.u32 %v267, 7
    %v269 = vsub.s32 0, %v268
    %v270 = vrot.slane %v265, %v269
    %v271 = vmul.f32 %v261, %v251
    %v272 = vmul.f32 %v270, %v252
    %vm273 = vcmask 64512
    %v275 = vsel %vm273, %v233, 0
    %277 = vmatprep.subr.mxu0 0.0
    %278 = vmatpush1.msra.mxu0 %v38
    %279 = vmatprep.subr.mxu0 0.0
    %280 = vmatpush1.msra.mxu0 0.0
    %281 = vmatprep.subr.mxu0 0.0
    %282 = vmatpush1.msra.mxu0 0.0
    %283 = vmatprep.subr.mxu0 0.0
    %284 = vmatpush1.msra.mxu0 0.0
    %285 = vmatprep.subr.mxu0 0.0
    %286 = vmatpush1.msra.mxu0 0.0
    %287 = vmatprep.subr.mxu0 0.0
    %288 = vmatpush1.msra.mxu0 0.0
    %289 = vmatprep.subr.mxu0 0.0
    %290 = vmatpush1.msra.mxu0 0.0
    %291 = vmatprep.subr.mxu0 0.0
    %292 = vmatpush1.msra.mxu0 0.0
    %293 = vmatprep.subr.mxu0 0.0
    %294 = vmatpush1.msra.mxu0 0.0
    %295 = vmatprep.subr.mxu0 0.0
    %296 = vmatpush1.msra.mxu0 0.0
    %297 = vmatprep.subr.mxu0 0.0
    %298 = vmatpush1.msra.mxu0 0.0
    %299 = vmatprep.subr.mxu0 0.0
    %300 = vmatpush1.msra.mxu0 0.0
    %301 = vmatprep.subr.mxu0 0.0
    %302 = vmatpush1.msra.mxu0 0.0
    %303 = vmatprep.subr.mxu0 0.0
    %304 = vmatpush1.msra.mxu0 0.0
    %305 = vmatprep.subr.mxu0 0.0
    %306 = vmatpush1.msra.mxu0 0.0
    %307 = vmatprep.subr.mxu0 0.0
    %308 = vmatpush1.msra.mxu0 0.0
    %309 = vmatprep.subr.mxu0 0.0
    %310 = vmatpush1.msra.mxu0 0.0
    %311 = vmatprep.subr.mxu0 0.0
    %312 = vmatpush1.msra.mxu0 0.0
    %313 = vmatprep.subr.mxu0 0.0
    %314 = vmatpush1.msra.mxu0 0.0
    %315 = vmatprep.subr.mxu0 0.0
    %316 = vmatpush1.msra.mxu0 0.0
    %317 = vmatprep.subr.mxu0 0.0
    %318 = vmatpush1.msra.mxu0 0.0
    %319 = vmatprep.subr.mxu0 0.0
    %320 = vmatpush1.msra.mxu0 0.0
    %321 = vmatprep.subr.mxu0 0.0
    %322 = vmatpush1.msra.mxu0 0.0
    %323 = vmatprep.subr.mxu0 0.0
    %324 = vmatpush1.msra.mxu0 0.0
    %325 = vmatprep.subr.mxu0 0.0
    %326 = vmatpush1.msra.mxu0 0.0
    %327 = vmatprep.subr.mxu0 0.0
    %328 = vmatpush1.msra.mxu0 0.0
    %329 = vmatprep.subr.mxu0 0.0
    %330 = vmatpush1.msra.mxu0 0.0
    %331 = vmatprep.subr.mxu0 0.0
    %332 = vmatpush1.msra.mxu0 0.0
    %333 = vmatprep.subr.mxu0 0.0
    %334 = vmatpush1.msra.mxu0 0.0
    %335 = vmatprep.subr.mxu0 0.0
    %336 = vmatpush1.msra.mxu0 0.0
    %337 = vmatprep.subr.mxu0 0.0
    %338 = vmatpush1.msra.mxu0 0.0
    %339 = vmatprep.subr.mxu0 0.0
    %340 = vmatpush1.msra.mxu0 0.0
    %341 = vmatprep.mubr.f32.mxu0 0.0
    %342 = vmatmul.mubr.f32.gmra.mrb[0].mxu0 %v275
    %v343 = vpop.f32.mrb[0].mxu0
    %v344 = vadd.f32 0.0, %v343
    %v345 = vpop.f32.mrb[0].mxu0
    %346 = vdwg.mxu0
    %v348 = vsel %vm273, %v235, 0
    %350 = vmatprep.subr.mxu0 0.0
    %351 = vmatpush1.msra.mxu0 %v39
    %352 = vmatprep.subr.mxu0 0.0
    %353 = vmatpush1.msra.mxu0 0.0
    %354 = vmatprep.subr.mxu0 0.0
    %355 = vmatpush1.msra.mxu0 0.0
    %356 = vmatprep.subr.mxu0 0.0
    %357 = vmatpush1.msra.mxu0 0.0
    %358 = vmatprep.subr.mxu0 0.0
    %359 = vmatpush1.msra.mxu0 0.0
    %360 = vmatprep.subr.mxu0 0.0
    %361 = vmatpush1.msra.mxu0 0.0
    %362 = vmatprep.subr.mxu0 0.0
    %363 = vmatpush1.msra.mxu0 0.0
    %364 = vmatprep.subr.mxu0 0.0
    %365 = vmatpush1.msra.mxu0 0.0
    %366 = vmatprep.subr.mxu0 0.0
    %367 = vmatpush1.msra.mxu0 0.0
    %368 = vmatprep.subr.mxu0 0.0
    %369 = vmatpush1.msra.mxu0 0.0
    %370 = vmatprep.subr.mxu0 0.0
    %371 = vmatpush1.msra.mxu0 0.0
    %372 = vmatprep.subr.mxu0 0.0
    %373 = vmatpush1.msra.mxu0 0.0
    %374 = vmatprep.subr.mxu0 0.0
    %375 = vmatpush1.msra.mxu0 0.0
    %376 = vmatprep.subr.mxu0 0.0
    %377 = vmatpush1.msra.mxu0 0.0
    %378 = vmatprep.subr.mxu0 0.0
    %379 = vmatpush1.msra.mxu0 0.0
    %380 = vmatprep.subr.mxu0 0.0
    %381 = vmatpush1.msra.mxu0 0.0
    %382 = vmatprep.subr.mxu0 0.0
    %383 = vmatpush1.msra.mxu0 0.0
    %384 = vmatprep.subr.mxu0 0.0
    %385 = vmatpush1.msra.mxu0 0.0
    %386 = vmatprep.subr.mxu0 0.0
    %387 = vmatpush1.msra.mxu0 0.0
    %388 = vmatprep.subr.mxu0 0.0
    %389 = vmatpush1.msra.mxu0 0.0
    %390 = vmatprep.subr.mxu0 0.0
    %391 = vmatpush1.msra.mxu0 0.0
    %392 = vmatprep.subr.mxu0 0.0
    %393 = vmatpush1.msra.mxu0 0.0
    %394 = vmatprep.subr.mxu0 0.0
    %395 = vmatpush1.msra.mxu0 0.0
    %396 = vmatprep.subr.mxu0 0.0
    %397 = vmatpush1.msra.mxu0 0.0
    %398 = vmatprep.subr.mxu0 0.0
    %399 = vmatpush1.msra.mxu0 0.0
    %400 = vmatprep.subr.mxu0 0.0
    %401 = vmatpush1.msra.mxu0 0.0
    %402 = vmatprep.subr.mxu0 0.0
    %403 = vmatpush1.msra.mxu0 0.0
    %404 = vmatprep.subr.mxu0 0.0
    %405 = vmatpush1.msra.mxu0 0.0
    %406 = vmatprep.subr.mxu0 0.0
    %407 = vmatpush1.msra.mxu0 0.0
    %408 = vmatprep.subr.mxu0 0.0
    %409 = vmatpush1.msra.mxu0 0.0
    %410 = vmatprep.subr.mxu0 0.0
    %411 = vmatpush1.msra.mxu0 0.0
    %412 = vmatprep.subr.mxu0 0.0
    %413 = vmatpush1.msra.mxu0 0.0
    %414 = vmatprep.mubr.f32.mxu0 0.0
    %415 = vmatmul.mubr.f32.gmra.mrb[0].mxu0 %v348
    %v416 = vpop.f32.mrb[0].mxu0
    %v417 = vadd.f32 0.0, %v416
    %v418 = vpop.f32.mrb[0].mxu0
    %419 = vdwg.mxu0
    %v420 = vadd.f32 %v271, %v344
    %v421 = vadd.f32 %v272, %v417
    %vm422 = vcmask 253952
    %423 = vst.msk [vmem:[#allocation4] sm:$0x1] %vm422, %v420
    %424 = vst.msk [vmem:[#allocation4 + $0x1] sm:$0x1] %vm422, %v421
    %425 = vst.msk [vmem:[#allocation2] sm:$0x1] %vm248, %v204
    %426 = vst.msk [vmem:[#allocation2 + $0x1] sm:$0x1] %vm248, %v205
    // Predicated region
    $region18: #{tpu_custom_call.1} parent=1 // pred_check
      %p427 = pneg %p26
    $region19: #{tpu_custom_call.1} parent=1 // pred_check_branch
      %429 = sbr.rel (%p427) target = $region21
    $region20: #{tpu_custom_call.1} parent=1 // pred_region
      %v430 = vld [vmem:[#allocation4] sm:$0x1]
      %v431 = vld [vmem:[#allocation4 + $0x1] sm:$0x1]
      %v432 = vld [vmem:[#allocation3] sm:$0x1]
      %v433 = vld [vmem:[#allocation3 + $0x1] sm:$0x1]
      %v434 = vrcp.pop %v432
      %v435 = vrcp.pop %v433
      %437 = vset.pattern.permute.xlu0 0
      %438 = vperm.xlu0 %437, %v434
      %v439 = vpop.permute.xlu0 %438
      %v441 = vlaneseq
      %v442 = vshrl.u32 %v441, 7
      %v443 = vsub.s32 0, %v442
      %v444 = vrot.slane %v439, %v443
      %446 = vset.pattern.permute.xlu0 0
      %447 = vperm.xlu0 %446, %v435
      %v448 = vpop.permute.xlu0 %447
      %v450 = vlaneseq
      %v451 = vshrl.u32 %v450, 7
      %v452 = vsub.s32 0, %v451
      %v453 = vrot.slane %v448, %v452
      %v454 = vmul.f32 %v430, %v444
      %v455 = vmul.f32 %v431, %v453
      %v458 = vcombine.low %v454, %v455
      %v460 = vunpack.c.l.s4 1966171168
      %v461 = vunpack.c.0.s8 %v460
      %v462 = vlaneseq
      %v463 = vshrl.u32 %v462, 7
      %v464 = vsub.s32 %v461, %v463
      %v465 = vrot.slane %v458, %v464
      %v467 = vunpack.c.l.s4 1966171168
      %v468 = vunpack.c.0.s8 %v467
      %v469 = vlaneseq
      %v470 = vshrl.u32 %v469, 7
      %v471 = vsub.s32 %v468, %v470
      %v472 = vrot.slane %v465, %v471
      %vm474 = vcmask 254976
      %475 = vst.msk [vmem:[#allocation8] sm:$0x3] %vm474, %v472
    $region21: #{tpu_custom_call.1} parent=1 // pred_fallthru
      _
    // Predicated region
    $region22: #{tpu_custom_call.1} parent=1 // pred_check
      _
    $region23: #{tpu_custom_call.1} parent=1 // pred_check_branch
      %477 = sbr.rel (0) target = $region25
    $region24: #{tpu_custom_call.1} parent=1 // pred_region
      %s479 = ssub.s32 32, 32
      %480 = vsyncadd [#allocation7], %s479
      %s482 = sshll.u32 [#allocation8], 4
      %s483 = int_to_ptr.vmem [resolvable:$true] %s482
      %485 = dma.vmem_to_hbm [thread:$0]  %s483, 32, %s2, [#allocation7]
    $region25: #{tpu_custom_call.1} parent=1 // pred_fallthru
      _
    // Predicated region
    $region26: #{tpu_custom_call.1} parent=1 // pred_check
      _
    $region27: #{tpu_custom_call.1} parent=1 // pred_check_branch
      %487 = sbr.rel (0) target = $region29
    $region28: #{tpu_custom_call.1} parent=1 // pred_region
      %488 = dma.done [#allocation7], 32
    $region29: #{tpu_custom_call.1} parent=1 // pred_fallthru
      _
    %489 = vsyncpa [#allocation6], 1
    %490 = vsyncpa [#allocation7], 1

</llo_original>
